<compile_context>
chip_gen: v6e
topology: v6e:2x2x1
jax: 0.10.0
libtpu: 0.0.40
codegen_flags: <defaults>
</compile_context>

<pallas_src>
import jax
import jax.numpy as jnp
from jax.experimental import pallas as pl
from jax.experimental.pallas import tpu as pltpu


def policy_kernel(x_ref, w1_ref, b1_ref, wh_ref, bh_ref, out_ref):
    # fc1 + ReLU.  Weights arrive in bf16 (half the HBM bytes); activations
    # are cast to bf16 for the MXU's native path; accumulation is f32.
    h = jnp.dot(x_ref[...].astype(jnp.bfloat16), w1_ref[...],
                preferred_element_type=jnp.float32)
    h = jnp.maximum(h + b1_ref[...], 0.0)
    # Fused head: [fc2_mean | fc3] -> single (B, A+1) matmul + store.
    out_ref[...] = (
        jnp.dot(h.astype(jnp.bfloat16), wh_ref[...],
                preferred_element_type=jnp.float32)
        + bh_ref[...]
    )


def prepare_params(w1, b1, w2, b2, w3, b3, sigma):
    """One-time parameter preparation (call at init time, NOT per forward).

    Fuses fc2_mean and fc3 into a single (H, A+1) head weight (no zero
    padding) and stores the matmul weights in bf16.  Biases stay f32.
    """
    w_head = jnp.concatenate([w2, w3], axis=1).astype(jnp.bfloat16)
    b_head = jnp.concatenate([b2, b3], axis=1).astype(jnp.float32)
    return (w1.astype(jnp.bfloat16), b1.astype(jnp.float32),
            w_head, b_head, sigma.astype(jnp.float32))


def policy_forward(x, w1, b1, w_head, b_head, sigma, *, batch_tile=None):
    B, S = x.shape
    H = w1.shape[1]
    HEAD = w_head.shape[1]        # action_space + 1 (value head)
    A = HEAD - 1

    flops = 2 * B * S * H + 2 * B * H * HEAD
    bytes_accessed = (2 * (w1.size + w_head.size)                 # bf16 weights
                      + 4 * (x.size + b1.size + b_head.size + B * HEAD))
    cost = pl.CostEstimate(flops=flops, transcendentals=0,
                           bytes_accessed=bytes_accessed)

    if batch_tile is None or B <= batch_tile:
        # Tiny problem (<1 MB working set): single invocation, no grid.
        out = pl.pallas_call(
            policy_kernel,
            out_shape=jax.ShapeDtypeStruct((B, HEAD), jnp.float32),
            in_specs=[pl.BlockSpec(memory_space=pltpu.MemorySpace.VMEM)] * 5,
            out_specs=pl.BlockSpec(memory_space=pltpu.MemorySpace.VMEM),
            cost_estimate=cost,
        )(x, w1, b1, w_head, b_head)
    else:
        # Large rollout batches: parallel batch grid (uses both TensorCores
        # on v7x; harmless on v5e/v6e).  Per-step tile bytes stay tiny, well
        # under v7x's 64 MiB VMEM.
        TB = batch_tile
        out = pl.pallas_call(
            policy_kernel,
            out_shape=jax.ShapeDtypeStruct((B, HEAD), jnp.float32),
            grid=(pl.cdiv(B, TB),),
            in_specs=[
                pl.BlockSpec((TB, S), lambda i: (i, 0)),
                pl.BlockSpec((S, H), lambda i: (0, 0)),
                pl.BlockSpec((1, H), lambda i: (0, 0)),
                pl.BlockSpec((H, HEAD), lambda i: (0, 0)),
                pl.BlockSpec((1, HEAD), lambda i: (0, 0)),
            ],
            out_specs=pl.BlockSpec((TB, HEAD), lambda i: (i, 0)),
            cost_estimate=cost,
            compiler_params=pltpu.CompilerParams(
                dimension_semantics=("parallel",)),
        )(x, w1, b1, w_head, b_head)

    action_mean = out[:, :A]
    value = out[:, A:]
    # softplus(sigma) is independent of x -> keep it out of the kernel.
    sigma_out = jax.nn.softplus(sigma)
    return action_mean, sigma_out, value


def init_params(key, state_space, action_space, hidden=512):
    # Matches the module's init_weights(): Linear weights ~ N(0,1),
    # biases = 0, sigma = 10.0.  Weights stored transposed (in,out) for x @ W.
    k1, k2, k3 = jax.random.split(key, 3)
    w1 = jax.random.normal(k1, (state_space, hidden), jnp.float32)
    b1 = jnp.zeros((1, hidden), jnp.float32)
    w2 = jax.random.normal(k2, (hidden, action_space), jnp.float32)
    b2 = jnp.zeros((1, action_space), jnp.float32)
    w3 = jax.random.normal(k3, (hidden, 1), jnp.float32)
    b3 = jnp.zeros((1, 1), jnp.float32)
    sigma = jnp.full((1, 1), 10.0, jnp.float32)
    return w1, b1, w2, b2, w3, b3, sigma


if __name__ == "__main__":
    state_space = 4      # CartPole observation dim
    action_space = 1     # continuous action dim
    batch = 8

    key = jax.random.PRNGKey(0)
    pkey, xkey, xkey2 = jax.random.split(key, 3)
    raw = init_params(pkey, state_space, action_space)
    fused = prepare_params(*raw)     # done ONCE, outside the forward path
    x = jax.random.normal(xkey, (batch, state_space), jnp.float32)

    fwd = jax.jit(policy_forward, static_argnames=("batch_tile",))
    action_mean, sigma_out, value = fwd(x, *fused)
    jax.block_until_ready((action_mean, sigma_out, value))

    # ---- references ---------------------------------------------------------
    w1b, b1, w_head_b, b_head, sigma = fused
    w1f, b1f, w2f, b2f, w3f, b3f, _ = raw

    def bf16_ref(xin):
        # Identical arithmetic to the kernel (bf16 MXU inputs, f32 accum).
        h = jnp.maximum(
            jnp.dot(xin.astype(jnp.bfloat16), w1b,
                    preferred_element_type=jnp.float32) + b1, 0.0)
        o = jnp.dot(h.astype(jnp.bfloat16), w_head_b,
                    preferred_element_type=jnp.float32) + b_head
        return o[:, :action_space], o[:, action_space:]

    # 1) Tight check against a matching-precision JAX reference.
    mean_ref, value_ref = bf16_ref(x)
    assert jnp.allclose(action_mean, mean_ref, atol=1e-3, rtol=1e-3)
    assert jnp.allclose(value, value_ref, atol=1e-3, rtol=1e-3)

    # 2) Loose sanity check against the original f32 semantics (only
    #    deviation is bf16 weight/activation quantization, f32 accumulation).
    h_f32 = jnp.maximum(x @ w1f + b1f, 0.0)
    mean_f32 = h_f32 @ w2f + b2f
    value_f32 = h_f32 @ w3f + b3f
    assert jnp.allclose(action_mean, mean_f32, atol=1.0, rtol=3e-2)
    assert jnp.allclose(value, value_f32, atol=1.0, rtol=3e-2)

    # 3) sigma path (pure JAX) is exact.
    assert jnp.allclose(sigma_out, jax.nn.softplus(raw[-1]), atol=1e-6)

    # 4) Exercise the gridded (large-batch / v7x dual-TC) path.
    x_big = jax.random.normal(xkey2, (64, state_space), jnp.float32)
    mean_g, _, value_g = fwd(x_big, *fused, batch_tile=16)
    jax.block_until_ready((mean_g, value_g))
    mean_gr, value_gr = bf16_ref(x_big)
    assert jnp.allclose(mean_g, mean_gr, atol=1e-3, rtol=1e-3)
    assert jnp.allclose(value_g, value_gr, atol=1e-3, rtol=1e-3)

    print("KERNEL_OK")
</pallas_src>

<mosaic_0001>
module attributes {stable_mosaic.version = 11 : i64} {
  func.func @policy_kernel(%arg0: memref<8x4xf32, #tpu.memory_space<vmem>>, %arg1: memref<4x512xbf16, #tpu.memory_space<vmem>>, %arg2: memref<1x512xf32, #tpu.memory_space<vmem>>, %arg3: memref<512x2xbf16, #tpu.memory_space<vmem>>, %arg4: memref<1x2xf32, #tpu.memory_space<vmem>>, %arg5: memref<8x2xf32, #tpu.memory_space<vmem>>) attributes {dimension_semantics = [], scalar_prefetch = 0 : i64, scratch_operands = 0 : i64, tpu.core_type = #tpu.core_type<tc>} {
    %c0 = arith.constant 0 : index
    %c0_0 = arith.constant 0 : index
    %0 = vector.load %arg0[%c0, %c0_0] : memref<8x4xf32, #tpu.memory_space<vmem>>, vector<8x4xf32>
    %1 = arith.truncf %0 : vector<8x4xf32> to vector<8x4xbf16>
    %c0_1 = arith.constant 0 : index
    %c0_2 = arith.constant 0 : index
    %2 = vector.load %arg1[%c0_1, %c0_2] : memref<4x512xbf16, #tpu.memory_space<vmem>>, vector<4x512xbf16>
    %cst = arith.constant dense<0.000000e+00> : vector<8x512xf32>
    %3 = tpu.matmul %1, %2, %cst {dimension_numbers = #tpu.dot_dimension_numbers<[1], [0], [0], [1], [0, 0, 1, 1], [], []>} : vector<8x4xbf16>, vector<4x512xbf16>, vector<8x512xf32> -> vector<8x512xf32>
    %c0_3 = arith.constant 0 : index
    %c0_4 = arith.constant 0 : index
    %4 = vector.load %arg2[%c0_3, %c0_4] : memref<1x512xf32, #tpu.memory_space<vmem>>, vector<1x512xf32>
    %5 = vector.broadcast %4 : vector<1x512xf32> to vector<8x512xf32>
    %6 = arith.addf %3, %5 : vector<8x512xf32>
    %cst_5 = arith.constant 0.000000e+00 : f32
    %7 = vector.broadcast %cst_5 : f32 to vector<8x512xf32>
    %8 = arith.maximumf %6, %7 : vector<8x512xf32>
    %9 = arith.truncf %8 : vector<8x512xf32> to vector<8x512xbf16>
    %c0_6 = arith.constant 0 : index
    %c0_7 = arith.constant 0 : index
    %10 = vector.load %arg3[%c0_6, %c0_7] : memref<512x2xbf16, #tpu.memory_space<vmem>>, vector<512x2xbf16>
    %cst_8 = arith.constant dense<0.000000e+00> : vector<8x2xf32>
    %11 = tpu.matmul %9, %10, %cst_8 {dimension_numbers = #tpu.dot_dimension_numbers<[1], [0], [0], [1], [0, 0, 1, 1], [], []>} : vector<8x512xbf16>, vector<512x2xbf16>, vector<8x2xf32> -> vector<8x2xf32>
    %c0_9 = arith.constant 0 : index
    %c0_10 = arith.constant 0 : index
    %12 = vector.load %arg4[%c0_9, %c0_10] : memref<1x2xf32, #tpu.memory_space<vmem>>, vector<1x2xf32>
    %13 = vector.broadcast %12 : vector<1x2xf32> to vector<8x2xf32>
    %14 = arith.addf %11, %13 : vector<8x2xf32>
    %c0_11 = arith.constant 0 : index
    %c0_12 = arith.constant 0 : index
    %15 = vector.load %arg5[%c0_11, %c0_12] : memref<8x2xf32, #tpu.memory_space<vmem>>, vector<8x2xf32>
    tpu.vector_store %arg5[%c0_11, %c0_12], %14 {strides = array<i32>} : memref<8x2xf32, #tpu.memory_space<vmem>>, vector<8x2xf32>,
    return
  }
}

</mosaic_0001>

<llo_original>
// kernel: policy_forward.1
$region0: #{policy_forward.1}
  #allocation0 [shape = 'u32[]', space=smem, size = 0x4, offset = 0x4, fixed_abs, tag = 'smem constant byte address 0x4 - core index']
  #allocation1 [shape = 'u32[144,128]{1,0:T(1,128)}', space=vmem, size = 0x12000, scoped, tag = 'internal scratch']
  %s0 = inlined_call_operand.vmem [shape: f32[8,4], index: 0, kind: input, shape index: {}]
  %s1 = inlined_call_operand.vmem [shape: bf16[4,512], index: 1, kind: input, shape index: {}]
  %s2 = inlined_call_operand.vmem [shape: f32[1,512], index: 2, kind: input, shape index: {}]
  %s3 = inlined_call_operand.vmem [shape: bf16[512,2], index: 3, kind: input, shape index: {}]
  %s4 = inlined_call_operand.vmem [shape: f32[1,2], index: 4, kind: input, shape index: {}]
  %s5 = inlined_call_operand.vmem [shape: f32[8,2], index: 5, kind: output, shape index: {}]
  %s6 = sld [smem:[#allocation0]]
  $region30: #{policy_forward.1} parent=0
    _
  %s8 = ssub.s32 1, %s6
  %s9 = scalar_select 0, %s8, %s6
  // Predicated region
  $region2: #{policy_forward.1} parent=0 // pred_check
    _
  $region3: #{policy_forward.1} parent=0 // pred_check_branch
    %11 = sbr.rel (0) target = $region5
  $region4: #{policy_forward.1} parent=0 // pred_region
    _
  $region5: #{policy_forward.1} parent=0 // pred_fallthru
    _
  // Predicated region
  $region6: #{policy_forward.1} parent=0 // pred_check
    _
  $region7: #{policy_forward.1} parent=0 // pred_check_branch
    %13 = sbr.rel (0) target = $region9
  $region8: #{policy_forward.1} parent=0 // pred_region
    _
  $region9: #{policy_forward.1} parent=0 // pred_fallthru
    _
  // Predicated region
  $region10: #{policy_forward.1} parent=0 // pred_check
    _
  $region11: #{policy_forward.1} parent=0 // pred_check_branch
    %15 = sbr.rel (0) target = $region13
  $region12: #{policy_forward.1} parent=0 // pred_region
    _
  $region13: #{policy_forward.1} parent=0 // pred_fallthru
    _
  // Predicated region
  $region14: #{policy_forward.1} parent=0 // pred_check
    _
  $region15: #{policy_forward.1} parent=0 // pred_check_branch
    %17 = sbr.rel (0) target = $region17
  $region16: #{policy_forward.1} parent=0 // pred_region
    _
  $region17: #{policy_forward.1} parent=0 // pred_fallthru
    _
  // Predicated region
  $region18: #{policy_forward.1} parent=0 // pred_check
    _
  $region19: #{policy_forward.1} parent=0 // pred_check_branch
    %19 = sbr.rel (0) target = $region21
  $region20: #{policy_forward.1} parent=0 // pred_region
    _
  $region21: #{policy_forward.1} parent=0 // pred_fallthru
    _
  %v21 = vld [vmem:[%s0] sm:$0xff]
  %v22 = vpack.c.bf16 %v21, %v21
  %v23 = vld [vmem:[%s1] sm:$0xff]
  %v24 = vld [vmem:[%s2] sm:$0xf]
  %v26 = vlaneseq
  %v27 = vshrl.u32 %v26, 7
  %v28 = vsub.s32 0, %v27
  %v29 = vrot.slane %v24, %v28
  %v30 = vlaneseq
  %v31 = vshrl.u32 %v30, 7
  %v32 = vsub.s32 1, %v31
  %v33 = vrot.slane %v24, %v32
  %v34 = vlaneseq
  %v35 = vshrl.u32 %v34, 7
  %v36 = vsub.s32 2, %v35
  %v37 = vrot.slane %v24, %v36
  %v38 = vlaneseq
  %v39 = vshrl.u32 %v38, 7
  %v40 = vsub.s32 3, %v39
  %v41 = vrot.slane %v24, %v40
  %v47 = vcombine.high %v23, %v23
  %v49 = vunpack.c.l.s4 1983009808
  %v50 = vunpack.c.0.s8 %v49
  %v51 = vlaneseq
  %v52 = vshrl.u32 %v51, 7
  %v53 = vsub.s32 %v50, %v52
  %v54 = vrot.slane %v23, %v53
  %v56 = vunpack.c.l.s4 1983009808
  %v57 = vunpack.c.0.s8 %v56
  %v58 = vlaneseq
  %v59 = vshrl.u32 %v58, 7
  %v60 = vsub.s32 %v57, %v59
  %v61 = vrot.slane %v47, %v60
  %v62 = vcombine.high %v54, %v54
  %v63 = vcombine.high %v61, %v61
  %vm64 = vcmask 31744
  %v66 = vsel %vm64, %v22, 0
  %vm68 = vcmask 1041408
  %v70 = vsel %vm68, %v54, 0
  %v73 = vsel %vm68, %v62, 0
  %v76 = vsel %vm68, %v61, 0
  %v79 = vsel %vm68, %v63, 0
  %81 = vmatprep.subr.bf16.mxu0 0
  %82 = vmatpush1.bf16.msra.mxu0 0
  %83 = vmatprep.subr.bf16.mxu0 0
  %84 = vmatpush1.bf16.msra.mxu0 0
  %85 = vmatprep.subr.bf16.mxu0 0
  %86 = vmatpush1.bf16.msra.mxu0 0
  %87 = vmatprep.subr.bf16.mxu0 0
  %88 = vmatpush1.bf16.msra.mxu0 0
  %89 = vmatprep.subr.bf16.mxu0 0
  %90 = vmatpush1.bf16.msra.mxu0 0
  %91 = vmatprep.subr.bf16.mxu0 0
  %92 = vmatpush1.bf16.msra.mxu0 0
  %93 = vmatprep.subr.bf16.mxu0 0
  %94 = vmatpush1.bf16.msra.mxu0 0
  %95 = vmatprep.subr.bf16.mxu0 %v73
  %96 = vmatpush1.bf16.msra.mxu0 %v70
  %97 = vmatprep.subr.bf16.mxu0 0
  %98 = vmatpush2.bf16.msra.mxu0 0
  %99 = vmatprep.subr.bf16.mxu0 0
  %100 = vmatpush2.bf16.msra.mxu0 0
  %101 = vmatprep.subr.bf16.mxu0 0
  %102 = vmatpush2.bf16.msra.mxu0 0
  %103 = vmatprep.subr.bf16.mxu0 0
  %104 = vmatpush2.bf16.msra.mxu0 0
  %105 = vmatprep.subr.bf16.mxu0 0
  %106 = vmatpush2.bf16.msra.mxu0 0
  %107 = vmatprep.subr.bf16.mxu0 0
  %108 = vmatpush2.bf16.msra.mxu0 0
  %109 = vmatprep.subr.bf16.mxu0 0
  %110 = vmatpush2.bf16.msra.mxu0 0
  %111 = vmatprep.subr.bf16.mxu0 0
  %112 = vmatpush2.bf16.msra.mxu0 0
  %113 = vmatprep.mubr.bf16.mxu0 0
  %114 = vmatmul.mubr.bf16.gmra.mxu0 %v66
  %v115 = vpop.f32.mrf.mxu0
  %v116 = vadd.f32 %v29, %v115
  %v117 = vpop.f32.mrf.mxu0
  %v118 = vadd.f32 %v33, %v117
  %v119 = vpop.f32.mrf.mxu0
  %v120 = vpop.f32.mrf.mxu0
  %121 = vdwg.mxu0
  %122 = vmatprep.subr.bf16.mxu0 0
  %123 = vmatpush1.bf16.msra.mxu0 0
  %124 = vmatprep.subr.bf16.mxu0 0
  %125 = vmatpush1.bf16.msra.mxu0 0
  %126 = vmatprep.subr.bf16.mxu0 0
  %127 = vmatpush1.bf16.msra.mxu0 0
  %128 = vmatprep.subr.bf16.mxu0 0
  %129 = vmatpush1.bf16.msra.mxu0 0
  %130 = vmatprep.subr.bf16.mxu0 0
  %131 = vmatpush1.bf16.msra.mxu0 0
  %132 = vmatprep.subr.bf16.mxu0 0
  %133 = vmatpush1.bf16.msra.mxu0 0
  %134 = vmatprep.subr.bf16.mxu0 0
  %135 = vmatpush1.bf16.msra.mxu0 0
  %136 = vmatprep.subr.bf16.mxu0 %v79
  %137 = vmatpush1.bf16.msra.mxu0 %v76
  %138 = vmatprep.subr.bf16.mxu0 0
  %139 = vmatpush2.bf16.msra.mxu0 0
  %140 = vmatprep.subr.bf16.mxu0 0
  %141 = vmatpush2.bf16.msra.mxu0 0
  %142 = vmatprep.subr.bf16.mxu0 0
  %143 = vmatpush2.bf16.msra.mxu0 0
  %144 = vmatprep.subr.bf16.mxu0 0
  %145 = vmatpush2.bf16.msra.mxu0 0
  %146 = vmatprep.subr.bf16.mxu0 0
  %147 = vmatpush2.bf16.msra.mxu0 0
  %148 = vmatprep.subr.bf16.mxu0 0
  %149 = vmatpush2.bf16.msra.mxu0 0
  %150 = vmatprep.subr.bf16.mxu0 0
  %151 = vmatpush2.bf16.msra.mxu0 0
  %152 = vmatprep.subr.bf16.mxu0 0
  %153 = vmatpush2.bf16.msra.mxu0 0
  %154 = vmatprep.mubr.bf16.mxu0 0
  %155 = vmatmul.mubr.bf16.gmra.mxu0 %v66
  %v156 = vpop.f32.mrf.mxu0
  %v157 = vadd.f32 %v37, %v156
  %v158 = vpop.f32.mrf.mxu0
  %v159 = vadd.f32 %v41, %v158
  %v160 = vpop.f32.mrf.mxu0
  %v161 = vpop.f32.mrf.mxu0
  %162 = vdwg.mxu0
  %v163 = vmax.f32 %v116, 0.0
  %v164 = vmax.f32 %v118, 0.0
  %v165 = vmax.f32 %v157, 0.0
  %v166 = vmax.f32 %v159, 0.0
  %v167 = vpack.c.bf16 %v163, %v163
  %v168 = vpack.c.bf16 %v164, %v164
  %v169 = vpack.c.bf16 %v165, %v165
  %v170 = vpack.c.bf16 %v166, %v166
  %v171 = vld [vmem:[%s3] sm:$0xf]
  %v172 = vld [vmem:[%s3 + $0x4] sm:$0xf]
  %v173 = vld [vmem:[%s3 + $0x8] sm:$0xf]
  %v174 = vld [vmem:[%s3 + $0xc] sm:$0xf]
  %v175 = vld [vmem:[%s3 + $0x10] sm:$0xf]
  %v176 = vld [vmem:[%s3 + $0x14] sm:$0xf]
  %v177 = vld [vmem:[%s3 + $0x18] sm:$0xf]
  %v178 = vld [vmem:[%s3 + $0x1c] sm:$0xf]
  %v179 = vld [vmem:[%s3 + $0x20] sm:$0xf]
  %v180 = vld [vmem:[%s3 + $0x24] sm:$0xf]
  %v181 = vld [vmem:[%s3 + $0x28] sm:$0xf]
  %v182 = vld [vmem:[%s3 + $0x2c] sm:$0xf]
  %v183 = vld [vmem:[%s3 + $0x30] sm:$0xf]
  %v184 = vld [vmem:[%s3 + $0x34] sm:$0xf]
  %v185 = vld [vmem:[%s3 + $0x38] sm:$0xf]
  %v186 = vld [vmem:[%s3 + $0x3c] sm:$0xf]
  %v187 = vld [vmem:[%s3 + $0x40] sm:$0xf]
  %v188 = vld [vmem:[%s3 + $0x44] sm:$0xf]
  %v189 = vld [vmem:[%s3 + $0x48] sm:$0xf]
  %v190 = vld [vmem:[%s3 + $0x4c] sm:$0xf]
  %v191 = vld [vmem:[%s3 + $0x50] sm:$0xf]
  %v192 = vld [vmem:[%s3 + $0x54] sm:$0xf]
  %v193 = vld [vmem:[%s3 + $0x58] sm:$0xf]
  %v194 = vld [vmem:[%s3 + $0x5c] sm:$0xf]
  %v195 = vld [vmem:[%s3 + $0x60] sm:$0xf]
  %v196 = vld [vmem:[%s3 + $0x64] sm:$0xf]
  %v197 = vld [vmem:[%s3 + $0x68] sm:$0xf]
  %v198 = vld [vmem:[%s3 + $0x6c] sm:$0xf]
  %v199 = vld [vmem:[%s3 + $0x70] sm:$0xf]
  %v200 = vld [vmem:[%s3 + $0x74] sm:$0xf]
  %v201 = vld [vmem:[%s3 + $0x78] sm:$0xf]
  %v202 = vld [vmem:[%s3 + $0x7c] sm:$0xf]
  %v203 = vld [vmem:[%s3 + $0x80] sm:$0xf]
  %v204 = vld [vmem:[%s3 + $0x84] sm:$0xf]
  %v205 = vld [vmem:[%s3 + $0x88] sm:$0xf]
  %v206 = vld [vmem:[%s3 + $0x8c] sm:$0xf]
  %v207 = vld [vmem:[%s3 + $0x90] sm:$0xf]
  %v208 = vld [vmem:[%s3 + $0x94] sm:$0xf]
  %v209 = vld [vmem:[%s3 + $0x98] sm:$0xf]
  %v210 = vld [vmem:[%s3 + $0x9c] sm:$0xf]
  %v211 = vld [vmem:[%s3 + $0xa0] sm:$0xf]
  %v212 = vld [vmem:[%s3 + $0xa4] sm:$0xf]
  %v213 = vld [vmem:[%s3 + $0xa8] sm:$0xf]
  %v214 = vld [vmem:[%s3 + $0xac] sm:$0xf]
  %v215 = vld [vmem:[%s3 + $0xb0] sm:$0xf]
  %v216 = vld [vmem:[%s3 + $0xb4] sm:$0xf]
  %v217 = vld [vmem:[%s3 + $0xb8] sm:$0xf]
  %v218 = vld [vmem:[%s3 + $0xbc] sm:$0xf]
  %v219 = vld [vmem:[%s3 + $0xc0] sm:$0xf]
  %v220 = vld [vmem:[%s3 + $0xc4] sm:$0xf]
  %v221 = vld [vmem:[%s3 + $0xc8] sm:$0xf]
  %v222 = vld [vmem:[%s3 + $0xcc] sm:$0xf]
  %v223 = vld [vmem:[%s3 + $0xd0] sm:$0xf]
  %v224 = vld [vmem:[%s3 + $0xd4] sm:$0xf]
  %v225 = vld [vmem:[%s3 + $0xd8] sm:$0xf]
  %v226 = vld [vmem:[%s3 + $0xdc] sm:$0xf]
  %v227 = vld [vmem:[%s3 + $0xe0] sm:$0xf]
  %v228 = vld [vmem:[%s3 + $0xe4] sm:$0xf]
  %v229 = vld [vmem:[%s3 + $0xe8] sm:$0xf]
  %v230 = vld [vmem:[%s3 + $0xec] sm:$0xf]
  %v231 = vld [vmem:[%s3 + $0xf0] sm:$0xf]
  %v232 = vld [vmem:[%s3 + $0xf4] sm:$0xf]
  %v233 = vld [vmem:[%s3 + $0xf8] sm:$0xf]
  %v234 = vld [vmem:[%s3 + $0xfc] sm:$0xf]
  %v235 = vld [vmem:[%s4] sm:$0x1]
  %v237 = vlaneseq
  %v238 = vshrl.u32 %v237, 7
  %v239 = vsub.s32 0, %v238
  %v240 = vrot.slane %v235, %v239
  %v306 = vunpack.c.l.b16 %v171
  %v307 = vunpack.c.l.b16 %v172
  %v308 = vunpack.c.l.b16 %v173
  %v309 = vunpack.c.l.b16 %v174
  %v310 = vunpack.c.l.b16 %v175
  %v311 = vunpack.c.l.b16 %v176
  %v312 = vunpack.c.l.b16 %v177
  %v313 = vunpack.c.l.b16 %v178
  %v314 = vunpack.c.l.b16 %v179
  %v315 = vunpack.c.l.b16 %v180
  %v316 = vunpack.c.l.b16 %v181
  %v317 = vunpack.c.l.b16 %v182
  %v318 = vunpack.c.l.b16 %v183
  %v319 = vunpack.c.l.b16 %v184
  %v320 = vunpack.c.l.b16 %v185
  %v321 = vunpack.c.l.b16 %v186
  %v322 = vunpack.c.l.b16 %v187
  %v323 = vunpack.c.l.b16 %v188
  %v324 = vunpack.c.l.b16 %v189
  %v325 = vunpack.c.l.b16 %v190
  %v326 = vunpack.c.l.b16 %v191
  %v327 = vunpack.c.l.b16 %v192
  %v328 = vunpack.c.l.b16 %v193
  %v329 = vunpack.c.l.b16 %v194
  %v330 = vunpack.c.l.b16 %v195
  %v331 = vunpack.c.l.b16 %v196
  %v332 = vunpack.c.l.b16 %v197
  %v333 = vunpack.c.l.b16 %v198
  %v334 = vunpack.c.l.b16 %v199
  %v335 = vunpack.c.l.b16 %v200
  %v336 = vunpack.c.l.b16 %v201
  %v337 = vunpack.c.l.b16 %v202
  %v338 = vunpack.c.l.b16 %v203
  %v339 = vunpack.c.l.b16 %v204
  %v340 = vunpack.c.l.b16 %v205
  %v341 = vunpack.c.l.b16 %v206
  %v342 = vunpack.c.l.b16 %v207
  %v343 = vunpack.c.l.b16 %v208
  %v344 = vunpack.c.l.b16 %v209
  %v345 = vunpack.c.l.b16 %v210
  %v346 = vunpack.c.l.b16 %v211
  %v347 = vunpack.c.l.b16 %v212
  %v348 = vunpack.c.l.b16 %v213
  %v349 = vunpack.c.l.b16 %v214
  %v350 = vunpack.c.l.b16 %v215
  %v351 = vunpack.c.l.b16 %v216
  %v352 = vunpack.c.l.b16 %v217
  %v353 = vunpack.c.l.b16 %v218
  %v354 = vunpack.c.l.b16 %v219
  %v355 = vunpack.c.l.b16 %v220
  %v356 = vunpack.c.l.b16 %v221
  %v357 = vunpack.c.l.b16 %v222
  %v358 = vunpack.c.l.b16 %v223
  %v359 = vunpack.c.l.b16 %v224
  %v360 = vunpack.c.l.b16 %v225
  %v361 = vunpack.c.l.b16 %v226
  %v362 = vunpack.c.l.b16 %v227
  %v363 = vunpack.c.l.b16 %v228
  %v364 = vunpack.c.l.b16 %v229
  %v365 = vunpack.c.l.b16 %v230
  %v366 = vunpack.c.l.b16 %v231
  %v367 = vunpack.c.l.b16 %v232
  %v368 = vunpack.c.l.b16 %v233
  %v369 = vunpack.c.l.b16 %v234
  %v370 = vpack.c.b16 %v307, %v306
  %v371 = vpack.c.b16 %v309, %v308
  %v372 = vpack.c.b16 %v311, %v310
  %v373 = vpack.c.b16 %v313, %v312
  %v374 = vpack.c.b16 %v315, %v314
  %v375 = vpack.c.b16 %v317, %v316
  %v376 = vpack.c.b16 %v319, %v318
  %v377 = vpack.c.b16 %v321, %v320
  %v378 = vpack.c.b16 %v323, %v322
  %v379 = vpack.c.b16 %v325, %v324
  %v380 = vpack.c.b16 %v327, %v326
  %v381 = vpack.c.b16 %v329, %v328
  %v382 = vpack.c.b16 %v331, %v330
  %v383 = vpack.c.b16 %v333, %v332
  %v384 = vpack.c.b16 %v335, %v334
  %v385 = vpack.c.b16 %v337, %v336
  %v386 = vpack.c.b16 %v339, %v338
  %v387 = vpack.c.b16 %v341, %v340
  %v388 = vpack.c.b16 %v343, %v342
  %v389 = vpack.c.b16 %v345, %v344
  %v390 = vpack.c.b16 %v347, %v346
  %v391 = vpack.c.b16 %v349, %v348
  %v392 = vpack.c.b16 %v351, %v350
  %v393 = vpack.c.b16 %v353, %v352
  %v394 = vpack.c.b16 %v355, %v354
  %v395 = vpack.c.b16 %v357, %v356
  %v396 = vpack.c.b16 %v359, %v358
  %v397 = vpack.c.b16 %v361, %v360
  %v398 = vpack.c.b16 %v363, %v362
  %v399 = vpack.c.b16 %v365, %v364
  %v400 = vpack.c.b16 %v367, %v366
  %v401 = vpack.c.b16 %v369, %v368
  %434 = vmatprep.subr.bf16.mxu0 0
  %435 = vmatpush1.bf16.msra.mxu0 %v377
  %436 = vmatprep.subr.bf16.mxu0 0
  %437 = vmatpush1.bf16.msra.mxu0 %v376
  %438 = vmatprep.subr.bf16.mxu0 0
  %439 = vmatpush1.bf16.msra.mxu0 %v375
  %440 = vmatprep.subr.bf16.mxu0 0
  %441 = vmatpush1.bf16.msra.mxu0 %v374
  %442 = vmatprep.subr.bf16.mxu0 0
  %443 = vmatpush1.bf16.msra.mxu0 %v373
  %444 = vmatprep.subr.bf16.mxu0 0
  %445 = vmatpush1.bf16.msra.mxu0 %v372
  %446 = vmatprep.subr.bf16.mxu0 0
  %447 = vmatpush1.bf16.msra.mxu0 %v371
  %448 = vmatprep.subr.bf16.mxu0 0
  %449 = vmatpush1.bf16.msra.mxu0 %v370
  %450 = vmatprep.subr.bf16.mxu0 0
  %451 = vmatpush2.bf16.msra.mxu0 %v385
  %452 = vmatprep.subr.bf16.mxu0 0
  %453 = vmatpush2.bf16.msra.mxu0 %v384
  %454 = vmatprep.subr.bf16.mxu0 0
  %455 = vmatpush2.bf16.msra.mxu0 %v383
  %456 = vmatprep.subr.bf16.mxu0 0
  %457 = vmatpush2.bf16.msra.mxu0 %v382
  %458 = vmatprep.subr.bf16.mxu0 0
  %459 = vmatpush2.bf16.msra.mxu0 %v381
  %460 = vmatprep.subr.bf16.mxu0 0
  %461 = vmatpush2.bf16.msra.mxu0 %v380
  %462 = vmatprep.subr.bf16.mxu0 0
  %463 = vmatpush2.bf16.msra.mxu0 %v379
  %464 = vmatprep.subr.bf16.mxu0 0
  %465 = vmatpush2.bf16.msra.mxu0 %v378
  %466 = vmatprep.mubr.bf16.mxu0 %v168
  %467 = vmatmul.mubr.bf16.gmra.mxu0 %v167
  %v468 = vpop.f32.mrf.mxu0
  %v469 = vadd.f32 %v240, %v468
  %v470 = vpop.f32.mrf.mxu0
  %v471 = vpop.f32.mrf.mxu0
  %v472 = vpop.f32.mrf.mxu0
  %473 = vdwg.mxu0
  %474 = vmatprep.subr.bf16.mxu0 0
  %475 = vmatpush1.bf16.msra.mxu0 %v393
  %476 = vmatprep.subr.bf16.mxu0 0
  %477 = vmatpush1.bf16.msra.mxu0 %v392
  %478 = vmatprep.subr.bf16.mxu0 0
  %479 = vmatpush1.bf16.msra.mxu0 %v391
  %480 = vmatprep.subr.bf16.mxu0 0
  %481 = vmatpush1.bf16.msra.mxu0 %v390
  %482 = vmatprep.subr.bf16.mxu0 0
  %483 = vmatpush1.bf16.msra.mxu0 %v389
  %484 = vmatprep.subr.bf16.mxu0 0
  %485 = vmatpush1.bf16.msra.mxu0 %v388
  %486 = vmatprep.subr.bf16.mxu0 0
  %487 = vmatpush1.bf16.msra.mxu0 %v387
  %488 = vmatprep.subr.bf16.mxu0 0
  %489 = vmatpush1.bf16.msra.mxu0 %v386
  %490 = vmatprep.subr.bf16.mxu0 0
  %491 = vmatpush2.bf16.msra.mxu0 %v401
  %492 = vmatprep.subr.bf16.mxu0 0
  %493 = vmatpush2.bf16.msra.mxu0 %v400
  %494 = vmatprep.subr.bf16.mxu0 0
  %495 = vmatpush2.bf16.msra.mxu0 %v399
  %496 = vmatprep.subr.bf16.mxu0 0
  %497 = vmatpush2.bf16.msra.mxu0 %v398
  %498 = vmatprep.subr.bf16.mxu0 0
  %499 = vmatpush2.bf16.msra.mxu0 %v397
  %500 = vmatprep.subr.bf16.mxu0 0
  %501 = vmatpush2.bf16.msra.mxu0 %v396
  %502 = vmatprep.subr.bf16.mxu0 0
  %503 = vmatpush2.bf16.msra.mxu0 %v395
  %504 = vmatprep.subr.bf16.mxu0 0
  %505 = vmatpush2.bf16.msra.mxu0 %v394
  %506 = vmatprep.mubr.bf16.mxu0 %v170
  %507 = vmatmul.mubr.bf16.gmra.mxu0 %v169
  %v508 = vpop.f32.mrf.mxu0
  %v509 = vadd.f32 %v469, %v508
  %v510 = vpop.f32.mrf.mxu0
  %v511 = vpop.f32.mrf.mxu0
  %v512 = vpop.f32.mrf.mxu0
  %513 = vdwg.mxu0
  %vm514 = vcmask 15360
  %515 = vst.msk [vmem:[%s5] sm:$0xff] %vm514, %v509
  // Predicated region
  $region22: #{policy_forward.1} parent=0 // pred_check
    _
  $region23: #{policy_forward.1} parent=0 // pred_check_branch
    %517 = sbr.rel (0) target = $region25
  $region24: #{policy_forward.1} parent=0 // pred_region
    _
  $region25: #{policy_forward.1} parent=0 // pred_fallthru
    _
  // Predicated region
  $region26: #{policy_forward.1} parent=0 // pred_check
    _
  $region27: #{policy_forward.1} parent=0 // pred_check_branch
    %519 = sbr.rel (0) target = $region29
  $region28: #{policy_forward.1} parent=0 // pred_region
    _
  $region29: #{policy_forward.1} parent=0 // pred_fallthru
    _

</llo_original>
